<compile_context>
chip_gen: v7x
topology: tpu7x:2x2x1
jax: 0.10.0
libtpu: 0.0.40
codegen_flags: <defaults>
</compile_context>

<pallas_src>
import functools
import math

import jax
import jax.numpy as jnp
from jax.experimental import pallas as pl
from jax.experimental.pallas import tpu as pltpu


_TILE_BYTE_BUDGET = 4 * 1024 * 1024    # per input block (Pallas double-buffers it)
_VMEM_LIMIT_BYTES = 32 * 1024 * 1024   # <= physical VMEM on v5e/v6e (128 MiB) and v7x (64 MiB)
_MAX_LANE_TILE = 2048                  # lanes per K tile in the general path
_MAX_ROW_TILE = 1024


def _round_up(value, multiple):
    return ((value + multiple - 1) // multiple) * multiple


def _sublane_unit(itemsize):
    # f32 -> 8, bf16 -> 16 (packed sublanes), int8/fp8 -> 32.
    return 8 if itemsize >= 4 else (16 if itemsize == 2 else 32)


def _choose_row_tile(rows, bytes_per_row, sublane=8):
    """Row (sublane) tile: aligned, <= ~4 MiB per block, >= 2 tiles when possible."""
    if rows <= sublane:
        return rows                      # block dim == full array dim is always legal
    tr = (_TILE_BYTE_BUDGET // max(bytes_per_row, 1)) // sublane * sublane
    tr = max(sublane, min(tr, _MAX_ROW_TILE, _round_up(rows, sublane)))
    # Keep >= 2 row tiles so the "parallel" axis can feed both TensorCores (v7x).
    tr = min(tr, max(sublane, _round_up(pl.cdiv(rows, 2), sublane)))
    return tr


# ---------------------------------------------------------------------------
# Packed small-K path: (R, K) viewed as (R/g, 128), g = 128 // K groups/row.
# ---------------------------------------------------------------------------
def _packed_mean_kernel(x_ref, o_ref, *, group_k, inv_k):
    x = x_ref[...].astype(jnp.float32)            # (TR, 128): full-lane loads
    groups = x.shape[-1] // group_k
    for j in range(groups):                        # segmented sum per group
        seg = x[:, j * group_k:(j + 1) * group_k]  # (TR, K) static lane slice
        s = jnp.sum(seg, axis=-1, keepdims=True)   # (TR, 1)
        o_ref[:, j:j + 1] = (s * inv_k).astype(o_ref.dtype)


def _mean_packed_small_k(x2d, rows, k, lead_shape):
    g = 128 // k
    rows_p = rows // g
    xp = x2d.reshape(rows_p, 128)                  # free row-major reshape
    itemsize = xp.dtype.itemsize
    tr = _choose_row_tile(rows_p, 128 * itemsize, _sublane_unit(itemsize))
    grid = (pl.cdiv(rows_p, tr),)

    cost = pl.CostEstimate(
        flops=rows * k, transcendentals=0,
        bytes_accessed=rows * k * itemsize + rows * itemsize)

    out = pl.pallas_call(
        functools.partial(_packed_mean_kernel, group_k=k, inv_k=1.0 / k),
        out_shape=jax.ShapeDtypeStruct((rows_p, g), x2d.dtype),
        grid_spec=pltpu.PrefetchScalarGridSpec(
            num_scalar_prefetch=0,
            grid=grid,
            in_specs=[pl.BlockSpec((tr, 128), lambda i: (i, 0))],
            out_specs=pl.BlockSpec((tr, g), lambda i: (i, 0)),
        ),
        compiler_params=pltpu.CompilerParams(
            dimension_semantics=("parallel",),
            vmem_limit_bytes=_VMEM_LIMIT_BYTES),
        cost_estimate=cost,
    )(xp)
    # (rows_p, g) flattens row-major back to the original row order.
    return out.reshape(lead_shape)


# ---------------------------------------------------------------------------
# General path: grid (row tiles, K tiles), deferred cross-lane reduce.
# ---------------------------------------------------------------------------
def _general_mean_kernel(x_ref, o_ref, acc_ref, *, true_k, block_k, need_mask,
                         inv_k):
    k = pl.program_id(1)

    @pl.when(k == 0)
    def _init():
        acc_ref[...] = jnp.zeros_like(acc_ref)

    x = x_ref[...].astype(jnp.float32)             # (TR, TK)
    if need_mask:
        # Zero the ragged lane tail introduced by the cdiv grid (OOB block
        # contents are undefined), using the true K as the bound.
        lane = jax.lax.broadcasted_iota(jnp.int32, x.shape, 1)
        x = jnp.where(k * block_k + lane < true_k, x, 0.0)

    # Fold the TK lanes down to 128 with aligned, pure-VPU adds (no per-step
    # cross-lane work, no narrow read-modify-write of a (TR, 1) accumulator).
    acc = acc_ref[...]
    for j in range(block_k // 128):
        acc = acc + x[:, j * 128:(j + 1) * 128]
    acc_ref[...] = acc

    @pl.when(k == pl.num_programs(1) - 1)
    def _finalize():
        # Single XLU lane reduce + scale per row tile.
        s = jnp.sum(acc_ref[...], axis=-1, keepdims=True)   # (TR, 1)
        o_ref[...] = (s * inv_k).astype(o_ref.dtype)


def _mean_general(x2d, rows, k, lead_shape):
    itemsize = x2d.dtype.itemsize
    n_k = max(1, pl.cdiv(k, _MAX_LANE_TILE))
    tk = min(_round_up(pl.cdiv(k, n_k), 128), _MAX_LANE_TILE)
    need_mask = (k % tk) != 0
    tr = _choose_row_tile(rows, tk * itemsize, _sublane_unit(itemsize))
    grid = (pl.cdiv(rows, tr), pl.cdiv(k, tk))

    cost = pl.CostEstimate(
        flops=rows * k, transcendentals=0,
        bytes_accessed=rows * k * itemsize + rows * itemsize)

    out = pl.pallas_call(
        functools.partial(_general_mean_kernel, true_k=k, block_k=tk,
                          need_mask=need_mask, inv_k=1.0 / k),
        out_shape=jax.ShapeDtypeStruct((rows, 1), x2d.dtype),
        grid_spec=pltpu.PrefetchScalarGridSpec(
            num_scalar_prefetch=0,
            grid=grid,
            in_specs=[pl.BlockSpec((tr, tk), lambda i, j: (i, j))],
            out_specs=pl.BlockSpec((tr, 1), lambda i, j: (i, 0)),
            scratch_shapes=[pltpu.VMEM((tr, 128), jnp.float32)],
        ),
        compiler_params=pltpu.CompilerParams(
            dimension_semantics=("parallel", "arbitrary"),
            vmem_limit_bytes=_VMEM_LIMIT_BYTES),
        cost_estimate=cost,
    )(x2d)
    return out.reshape(lead_shape)


# ---------------------------------------------------------------------------
# Public wrapper (forward of the PyTorch module).
# ---------------------------------------------------------------------------
def majority_voting(x, dim=-1):
    """Pallas TPU implementation of torch.mean(x, dim=dim)."""
    x = jnp.asarray(x)
    if x.ndim == 0:
        raise ValueError("majority_voting needs at least 1 dimension")
    if not jnp.issubdtype(x.dtype, jnp.floating):
        x = x.astype(jnp.float32)        # torch.mean rejects ints; promote instead

    axis = dim % x.ndim
    if axis != x.ndim - 1:
        # TODO(synk): direct non-minor-axis reduction kernel (avoids this HBM transpose).
        x = jnp.moveaxis(x, axis, -1)

    lead_shape = x.shape[:-1]
    k = x.shape[-1]
    rows = math.prod(lead_shape) if lead_shape else 1
    dtype = x.dtype

    if k == 0:
        return jnp.full(lead_shape, jnp.nan, dtype=dtype)   # mean over empty dim
    if rows == 0:
        return jnp.zeros(lead_shape, dtype=dtype)
    if k == 1:
        return x.reshape(lead_shape)                        # mean over singleton dim

    x2d = x.reshape(rows, k)

    if k < 128 and 128 % k == 0 and rows % (128 // k) == 0:
        return _mean_packed_small_k(x2d, rows, k, lead_shape)
    return _mean_general(x2d, rows, k, lead_shape)


class MajorityVoting:
    """Mirror of the PyTorch module: averages the input along `dim`."""

    def __init__(self, dim=-1):
        self.dim = dim

    def __call__(self, x):
        return majority_voting(x, dim=self.dim)


def _reference(x, dim=-1):
    return jnp.mean(x, axis=dim)


if __name__ == "__main__":
    key = jax.random.PRNGKey(0)
    k1, k2, k3 = jax.random.split(key, 3)

    # Primary shape implied by the module usage: (N, C, H, W) averaged over W.
    # K=16 exercises the lane-packed small-K path.
    x1 = jax.random.normal(k1, (2, 4, 16, 16), dtype=jnp.float32)
    voter = MajorityVoting(dim=-1)
    out1 = jax.block_until_ready(voter(x1))
    ref1 = _reference(x1, dim=-1)
    assert out1.shape == (2, 4, 16), out1.shape
    assert jnp.allclose(out1, ref1, atol=1e-5, rtol=1e-5), "packed path mismatch"

    # General path, K a multiple of 128 (no masking), two parallel row tiles.
    x2 = jax.random.normal(k2, (2, 48, 640), dtype=jnp.float32)
    out2 = jax.block_until_ready(majority_voting(x2, dim=-1))
    ref2 = _reference(x2, dim=-1)
    assert out2.shape == (2, 48), out2.shape
    assert jnp.allclose(out2, ref2, atol=1e-5, rtol=1e-5), "general path mismatch"

    # General path with cdiv tiling + in-kernel lane masking, and dim != -1.
    x3 = jax.random.normal(k3, (3, 200, 5), dtype=jnp.float32)
    out3 = jax.block_until_ready(majority_voting(x3, dim=1))
    ref3 = _reference(x3, dim=1)
    assert out3.shape == (3, 5), out3.shape
    assert jnp.allclose(out3, ref3, atol=1e-5, rtol=1e-5), "masked path mismatch"

    print("KERNEL_OK")
</pallas_src>

<mosaic_0001>
module attributes {stable_mosaic.version = 11 : i64} {
  func.func @_packed_mean_kernel(%arg0: i32, %arg1: memref<8x128xf32, #tpu.memory_space<vmem>>, %arg2: memref<8x8xf32, #tpu.memory_space<vmem>>) attributes {dimension_semantics = [#tpu.dimension_semantics<parallel>], iteration_bounds = array<i64: 2>, scalar_prefetch = 0 : i64, scratch_operands = 0 : i64, tpu.core_type = #tpu.core_type<tc>, window_params = [{transform_indices = @transform_0, window_bounds = array<i64: 8, 128>}, {transform_indices = @transform_1, window_bounds = array<i64: 8, 8>}]} {
    %c0 = arith.constant 0 : index
    %c0_0 = arith.constant 0 : index
    %0 = vector.load %arg1[%c0, %c0_0] : memref<8x128xf32, #tpu.memory_space<vmem>>, vector<8x128xf32>
    %1 = vector.extract_strided_slice %0 {offsets = [0, 0], sizes = [8, 16], strides = [1, 1]} : vector<8x128xf32> to vector<8x16xf32>
    %cst = arith.constant dense<0.000000e+00> : vector<8xf32>
    %2 = vector.multi_reduction <add>, %1, %cst [1] : vector<8x16xf32> to vector<8xf32>
    %3 = vector.shape_cast %2 : vector<8xf32> to vector<8x1xf32>
    %cst_1 = arith.constant 6.250000e-02 : f32
    %4 = vector.broadcast %cst_1 : f32 to vector<8x1xf32>
    %5 = arith.mulf %3, %4 : vector<8x1xf32>
    %c0_2 = arith.constant 0 : index
    %c0_3 = arith.constant 0 : index
    %6 = vector.load %arg2[%c0_2, %c0_3] : memref<8x8xf32, #tpu.memory_space<vmem>>, vector<8x1xf32>
    tpu.vector_store %arg2[%c0_2, %c0_3], %5 {strides = array<i32>} : memref<8x8xf32, #tpu.memory_space<vmem>>, vector<8x1xf32>,
    %7 = vector.extract_strided_slice %0 {offsets = [0, 16], sizes = [8, 16], strides = [1, 1]} : vector<8x128xf32> to vector<8x16xf32>
    %cst_4 = arith.constant dense<0.000000e+00> : vector<8xf32>
    %8 = vector.multi_reduction <add>, %7, %cst_4 [1] : vector<8x16xf32> to vector<8xf32>
    %9 = vector.shape_cast %8 : vector<8xf32> to vector<8x1xf32>
    %cst_5 = arith.constant 6.250000e-02 : f32
    %10 = vector.broadcast %cst_5 : f32 to vector<8x1xf32>
    %11 = arith.mulf %9, %10 : vector<8x1xf32>
    %c0_6 = arith.constant 0 : index
    %c1 = arith.constant 1 : index
    %12 = vector.load %arg2[%c0_6, %c1] : memref<8x8xf32, #tpu.memory_space<vmem>>, vector<8x1xf32>
    tpu.vector_store %arg2[%c0_6, %c1], %11 {strides = array<i32>} : memref<8x8xf32, #tpu.memory_space<vmem>>, vector<8x1xf32>,
    %13 = vector.extract_strided_slice %0 {offsets = [0, 32], sizes = [8, 16], strides = [1, 1]} : vector<8x128xf32> to vector<8x16xf32>
    %cst_7 = arith.constant dense<0.000000e+00> : vector<8xf32>
    %14 = vector.multi_reduction <add>, %13, %cst_7 [1] : vector<8x16xf32> to vector<8xf32>
    %15 = vector.shape_cast %14 : vector<8xf32> to vector<8x1xf32>
    %cst_8 = arith.constant 6.250000e-02 : f32
    %16 = vector.broadcast %cst_8 : f32 to vector<8x1xf32>
    %17 = arith.mulf %15, %16 : vector<8x1xf32>
    %c0_9 = arith.constant 0 : index
    %c2 = arith.constant 2 : index
    %18 = vector.load %arg2[%c0_9, %c2] : memref<8x8xf32, #tpu.memory_space<vmem>>, vector<8x1xf32>
    tpu.vector_store %arg2[%c0_9, %c2], %17 {strides = array<i32>} : memref<8x8xf32, #tpu.memory_space<vmem>>, vector<8x1xf32>,
    %19 = vector.extract_strided_slice %0 {offsets = [0, 48], sizes = [8, 16], strides = [1, 1]} : vector<8x128xf32> to vector<8x16xf32>
    %cst_10 = arith.constant dense<0.000000e+00> : vector<8xf32>
    %20 = vector.multi_reduction <add>, %19, %cst_10 [1] : vector<8x16xf32> to vector<8xf32>
    %21 = vector.shape_cast %20 : vector<8xf32> to vector<8x1xf32>
    %cst_11 = arith.constant 6.250000e-02 : f32
    %22 = vector.broadcast %cst_11 : f32 to vector<8x1xf32>
    %23 = arith.mulf %21, %22 : vector<8x1xf32>
    %c0_12 = arith.constant 0 : index
    %c3 = arith.constant 3 : index
    %24 = vector.load %arg2[%c0_12, %c3] : memref<8x8xf32, #tpu.memory_space<vmem>>, vector<8x1xf32>
    tpu.vector_store %arg2[%c0_12, %c3], %23 {strides = array<i32>} : memref<8x8xf32, #tpu.memory_space<vmem>>, vector<8x1xf32>,
    %25 = vector.extract_strided_slice %0 {offsets = [0, 64], sizes = [8, 16], strides = [1, 1]} : vector<8x128xf32> to vector<8x16xf32>
    %cst_13 = arith.constant dense<0.000000e+00> : vector<8xf32>
    %26 = vector.multi_reduction <add>, %25, %cst_13 [1] : vector<8x16xf32> to vector<8xf32>
    %27 = vector.shape_cast %26 : vector<8xf32> to vector<8x1xf32>
    %cst_14 = arith.constant 6.250000e-02 : f32
    %28 = vector.broadcast %cst_14 : f32 to vector<8x1xf32>
    %29 = arith.mulf %27, %28 : vector<8x1xf32>
    %c0_15 = arith.constant 0 : index
    %c4 = arith.constant 4 : index
    %30 = vector.load %arg2[%c0_15, %c4] : memref<8x8xf32, #tpu.memory_space<vmem>>, vector<8x1xf32>
    tpu.vector_store %arg2[%c0_15, %c4], %29 {strides = array<i32>} : memref<8x8xf32, #tpu.memory_space<vmem>>, vector<8x1xf32>,
    %31 = vector.extract_strided_slice %0 {offsets = [0, 80], sizes = [8, 16], strides = [1, 1]} : vector<8x128xf32> to vector<8x16xf32>
    %cst_16 = arith.constant dense<0.000000e+00> : vector<8xf32>
    %32 = vector.multi_reduction <add>, %31, %cst_16 [1] : vector<8x16xf32> to vector<8xf32>
    %33 = vector.shape_cast %32 : vector<8xf32> to vector<8x1xf32>
    %cst_17 = arith.constant 6.250000e-02 : f32
    %34 = vector.broadcast %cst_17 : f32 to vector<8x1xf32>
    %35 = arith.mulf %33, %34 : vector<8x1xf32>
    %c0_18 = arith.constant 0 : index
    %c5 = arith.constant 5 : index
    %36 = vector.load %arg2[%c0_18, %c5] : memref<8x8xf32, #tpu.memory_space<vmem>>, vector<8x1xf32>
    tpu.vector_store %arg2[%c0_18, %c5], %35 {strides = array<i32>} : memref<8x8xf32, #tpu.memory_space<vmem>>, vector<8x1xf32>,
    %37 = vector.extract_strided_slice %0 {offsets = [0, 96], sizes = [8, 16], strides = [1, 1]} : vector<8x128xf32> to vector<8x16xf32>
    %cst_19 = arith.constant dense<0.000000e+00> : vector<8xf32>
    %38 = vector.multi_reduction <add>, %37, %cst_19 [1] : vector<8x16xf32> to vector<8xf32>
    %39 = vector.shape_cast %38 : vector<8xf32> to vector<8x1xf32>
    %cst_20 = arith.constant 6.250000e-02 : f32
    %40 = vector.broadcast %cst_20 : f32 to vector<8x1xf32>
    %41 = arith.mulf %39, %40 : vector<8x1xf32>
    %c0_21 = arith.constant 0 : index
    %c6 = arith.constant 6 : index
    %42 = vector.load %arg2[%c0_21, %c6] : memref<8x8xf32, #tpu.memory_space<vmem>>, vector<8x1xf32>
    tpu.vector_store %arg2[%c0_21, %c6], %41 {strides = array<i32>} : memref<8x8xf32, #tpu.memory_space<vmem>>, vector<8x1xf32>,
    %43 = vector.extract_strided_slice %0 {offsets = [0, 112], sizes = [8, 16], strides = [1, 1]} : vector<8x128xf32> to vector<8x16xf32>
    %cst_22 = arith.constant dense<0.000000e+00> : vector<8xf32>
    %44 = vector.multi_reduction <add>, %43, %cst_22 [1] : vector<8x16xf32> to vector<8xf32>
    %45 = vector.shape_cast %44 : vector<8xf32> to vector<8x1xf32>
    %cst_23 = arith.constant 6.250000e-02 : f32
    %46 = vector.broadcast %cst_23 : f32 to vector<8x1xf32>
    %47 = arith.mulf %45, %46 : vector<8x1xf32>
    %c0_24 = arith.constant 0 : index
    %c7 = arith.constant 7 : index
    %48 = vector.load %arg2[%c0_24, %c7] : memref<8x8xf32, #tpu.memory_space<vmem>>, vector<8x1xf32>
    tpu.vector_store %arg2[%c0_24, %c7], %47 {strides = array<i32>} : memref<8x8xf32, #tpu.memory_space<vmem>>, vector<8x1xf32>,
    return
  }
  func.func @transform_0(%arg0: i32) -> (i32, i32) {
    %c0_i32 = arith.constant 0 : i32
    %c0_i32_0 = arith.constant 0 : i32
    return %arg0, %c0_i32 : i32, i32
  }
  func.func @transform_1(%arg0: i32) -> (i32, i32) {
    %c0_i32 = arith.constant 0 : i32
    %c0_i32_0 = arith.constant 0 : i32
    return %arg0, %c0_i32 : i32, i32
  }
}

</mosaic_0001>

<llo_original>
// kernel: tpu_custom_call.1
$region0: #{tpu_custom_call.1}
  #allocation0 [shape = 'u32[]', space=smem, size = 0x4, offset = 0x4, fixed_abs, tag = 'smem constant byte address 0x4 - core index']
  #allocation1 [shape = 'u32[144,128]{1,0:T(1,128)}', space=vmem, size = 0x12000, scoped, tag = 'internal scratch']
  %s0 = inlined_call_operand.hbm [shape: f32[16,128], index: 0, kind: input, shape index: {}]
  %s1 = inlined_call_operand.vmem [shape: f32[16,8], index: 1, kind: output, shape index: {}]
  %s2 = sld [smem:[#allocation0]]
  $region41: #{tpu_custom_call.1} parent=0
    _
  %s4 = ssub.s32 1, %s2
  %s5 = scalar_select 0, %s4, %s2
  $region1: #{tpu_custom_call.1} parent=0
    #allocation2 [shape = 'u8[8192]{0}', space=vmem, size = 0x2000, scoped, tag = 'input window, operand 0']
    #allocation3 [shape = 's32[2]{0}', space=sflag, size = 0x8, scoped, tag = 'scoped memory for tpu_custom_call.1']
    %6 = vsyncpa [#allocation3], 0
    %s7 = scalar_lea.sflag [#allocation3], 1
    %8 = vsyncpa %s7, 0
    loop: start=0, step=1, limit=4
    $region2: #{tpu_custom_call.1} parent=1 // loop_pre_header
      _
    $region3: #{tpu_custom_call.1} parent=1 // loop_header
      %s10 = sphi 0, %s14
      %p11 = scmp.ge.s32.totalorder %s10, 4
      %s20 = sphi 0, %s22
      %s23 = sphi 0, %s20
      %s24 = sphi 0, %s23
      %s40 = sphi 0, %s24
      %s46 = sphi 0, %s48
      %s49 = sphi 0, %s46
      %s50 = sphi 0, %s49
      %s66 = sphi 0, %s50
    $region4: #{tpu_custom_call.1} parent=1 // loop_header_branch
      %13 = sbr.rel (%p11) target = $region8
    $region5: #{tpu_custom_call.1} parent=1 // loop_body
      %s15 = ssub.s32 %s10, 1
      %s16 = ssub.s32 %s10, 2
      %s17 = sadd.s32 %s10, 1
      %s18 = ssub.s32 %s10, %s17
      %p19 = scmp.eq.s32.totalorder %s18, 0
      %s21 = sadd.s32 %s20, 1
      %s22 = scalar_select %p19, %s20, %s21
      %p25 = pneg %p19
      %p26 = scmp.eq.s32.totalorder %s10, 1
      %p27 = por %p25, %p26
      %p28 = scmp.ne.s32.totalorder %s20, %s23
      %p29 = scmp.eq.s32.totalorder %s10, 0
      %p30 = por %p28, %p29
      %p31 = scmp.ne.s32.totalorder %s20, %s23
      %p32 = scmp.eq.s32.totalorder %s15, 1
      %p33 = por %p31, %p32
      %p34 = scmp.ne.s32.totalorder %s23, %s24
      %p35 = scmp.eq.s32.totalorder %s15, 0
      %p36 = por %p34, %p35
      %p37 = scmp.ne.s32.totalorder %s23, %s24
      %p38 = scmp.eq.s32.totalorder %s16, 1
      %p39 = por %p37, %p38
      %p41 = scmp.ne.s32.totalorder %s24, %s40
      %p42 = scmp.eq.s32.totalorder %s16, 0
      %p43 = por %p41, %p42
      %s44 = ssub.s32 %s10, %s17
      %p45 = scmp.eq.s32.totalorder %s44, 0
      %s47 = sadd.s32 %s46, 1
      %s48 = scalar_select %p45, %s46, %s47
      %p51 = pneg %p45
      %p52 = scmp.eq.s32.totalorder %s10, 1
      %p53 = por %p51, %p52
      %p54 = scmp.ne.s32.totalorder %s46, %s49
      %p55 = scmp.eq.s32.totalorder %s10, 0
      %p56 = por %p54, %p55
      %p57 = scmp.ne.s32.totalorder %s46, %s49
      %p58 = scmp.eq.s32.totalorder %s15, 1
      %p59 = por %p57, %p58
      %p60 = scmp.ne.s32.totalorder %s49, %s50
      %p61 = scmp.eq.s32.totalorder %s15, 0
      %p62 = por %p60, %p61
      %p63 = scmp.ne.s32.totalorder %s49, %s50
      %p64 = scmp.eq.s32.totalorder %s16, 1
      %p65 = por %p63, %p64
      %p67 = scmp.ne.s32.totalorder %s50, %s66
      %p68 = scmp.eq.s32.totalorder %s16, 0
      %p69 = por %p67, %p68
      %p70 = scmp.le.s32.totalorder 1, %s10
      %p71 = scmp.lt.s32.totalorder %s10, 3
      %p72 = pnand %p70, %p71
      %p73 = pneg %p72
      // Predicated region
      $region9: #{tpu_custom_call.1} parent=5 // pred_check
        _
      $region10: #{tpu_custom_call.1} parent=5 // pred_check_branch
        %75 = sbr.rel (%p72) target = $region12
      $region11: #{tpu_custom_call.1} parent=5 // pred_region
        %s76 = ssub.s32 %s10, 1
      $region12: #{tpu_custom_call.1} parent=5 // pred_fallthru
        _
      %p77 = scmp.lt.s32.totalorder %s10, 2
      // Predicated region
      $region13: #{tpu_custom_call.1} parent=5 // pred_check
        %p78 = pneg %p77
      $region14: #{tpu_custom_call.1} parent=5 // pred_check_branch
        %80 = sbr.rel (%p78) target = $region16
      $region15: #{tpu_custom_call.1} parent=5 // pred_region
        // Predicated region
        $region17: #{tpu_custom_call.1} parent=15 // pred_check
          %p81 = pneg %p30
        $region18: #{tpu_custom_call.1} parent=15 // pred_check_branch
          %83 = sbr.rel (%p81) target = $region20
        $region19: #{tpu_custom_call.1} parent=15 // pred_region
          %s84 = sand.u32 %s20, 1
          %s85 = scalar_lea.sflag [#allocation3], %s84
          %s86 = sand.u32 %s20, 1
          %s87 = smul.addr %s86, 8
          %s88 = scalar_lea.vmem [#allocation2], %s87
          %s90 = ssub.s32 128, 128
          %91 = vsyncadd %s85, %s90
          %s92 = smul.addr %s10, 128
          %s93 = scalar_lea.hbm %s0, %s92
          %s95 = sshll.u32 %s88, 4
          %s96 = int_to_ptr.vmem [resolvable:$true] %s95
          %98 = dma.hbm_to_vmem [thread:$0]  %s93, 128, %s96, %s85
        $region20: #{tpu_custom_call.1} parent=15 // pred_fallthru
          _
      $region16: #{tpu_custom_call.1} parent=5 // pred_fallthru
        _
      %p99 = scmp.le.s32.totalorder 1, %s10
      %p100 = scmp.lt.s32.totalorder %s10, 3
      %p101 = pnand %p99, %p100
      %p102 = pneg %p101
      // Predicated region
      $region21: #{tpu_custom_call.1} parent=5 // pred_check
        _
      $region22: #{tpu_custom_call.1} parent=5 // pred_check_branch
        %104 = sbr.rel (%p101) target = $region24
      $region23: #{tpu_custom_call.1} parent=5 // pred_region
        %s105 = ssub.s32 %s10, 1
        %s106 = sand.u32 %s23, 1
        %s107 = scalar_lea.sflag [#allocation3], %s106
        %s108 = sand.u32 %s23, 1
        %s109 = smul.addr %s108, 8
        %s110 = scalar_lea.vmem [#allocation2], %s109
        // Predicated region
        $region25: #{tpu_custom_call.1} parent=23 // pred_check
          %p111 = pneg %p36
        $region26: #{tpu_custom_call.1} parent=23 // pred_check_branch
          %113 = sbr.rel (%p111) target = $region28
        $region27: #{tpu_custom_call.1} parent=23 // pred_region
          %114 = dma.done %s107, 128
        $region28: #{tpu_custom_call.1} parent=23 // pred_fallthru
          _
        %s115 = sand.u32 %s23, 1
        %s116 = scalar_lea.sflag [#allocation3], %s115
        %s117 = sand.u32 %s23, 1
        %s118 = smul.addr %s117, 8
        %s119 = scalar_lea.vmem [#allocation2], %s118
        %p120 = pneg %p36
        %p121 = pneg %p33
        %p122 = pneg %p62
        %p123 = pneg %p59
        %p124 = scmp.lt.s32.totalorder %s15, 1
        %s125 = scalar_select %p124, %s15, 1
        %s126 = smul.addr %s125, 8
        %s127 = scalar_lea.vmem %s1, %s126
        %p128 = scmp.lt.s32.totalorder %s15, 1
        %s129 = scalar_select %p128, %s15, 1
        %s130 = smul.addr %s129, 8
        %s131 = scalar_lea.vmem %s1, %s130
        %v132 = vld [vmem:[%s110] sm:$0xff]
        %vm133 = vcmask 130048
        %v134 = vsel %vm133, %v132, 0.0
        %135 = vadd.xlane.f32.xlu0 %v134
        %v136 = vpop.xlane.xlu0 %135
        %v137 = vmul.f32 %v136, 0.0625
        %vm138 = vcmask 7168
        %139 = vst.msk [vmem:[%s131] sm:$0xff] %vm138, %v137
        %141 = vrot.lane.b32.xlu0 %v132, 112
        %v142 = vpop.permute.xlu0 %141
        %v144 = vsel %vm133, %v142, 0.0
        %145 = vadd.xlane.f32.xlu0 %v144
        %v146 = vpop.xlane.xlu0 %145
        %v147 = vmul.f32 %v146, 0.0625
        %vm148 = vcmask 15368
        %149 = vst.msk [vmem:[%s131] sm:$0xff] %vm148, %v147
        %150 = vrot.lane.b32.xlu0 %v132, 96
        %v151 = vpop.permute.xlu0 %150
        %v153 = vsel %vm133, %v151, 0.0
        %154 = vadd.xlane.f32.xlu0 %v153
        %v155 = vpop.xlane.xlu0 %154
        %v156 = vmul.f32 %v155, 0.0625
        %vm157 = vcmask 23568
        %158 = vst.msk [vmem:[%s131] sm:$0xff] %vm157, %v156
        %159 = vrot.lane.b32.xlu0 %v132, 80
        %v160 = vpop.permute.xlu0 %159
        %v162 = vsel %vm133, %v160, 0.0
        %163 = vadd.xlane.f32.xlu0 %v162
        %v164 = vpop.xlane.xlu0 %163
        %v165 = vmul.f32 %v164, 0.0625
        %vm166 = vcmask 31768
        %167 = vst.msk [vmem:[%s131] sm:$0xff] %vm166, %v165
        %168 = vrot.lane.b32.xlu0 %v132, 64
        %v169 = vpop.permute.xlu0 %168
        %v171 = vsel %vm133, %v169, 0.0
        %172 = vadd.xlane.f32.xlu0 %v171
        %v173 = vpop.xlane.xlu0 %172
        %v174 = vmul.f32 %v173, 0.0625
        %vm175 = vcmask 39968
        %176 = vst.msk [vmem:[%s131] sm:$0xff] %vm175, %v174
        %177 = vrot.lane.b32.xlu0 %v132, 48
        %v178 = vpop.permute.xlu0 %177
        %v180 = vsel %vm133, %v178, 0.0
        %181 = vadd.xlane.f32.xlu0 %v180
        %v182 = vpop.xlane.xlu0 %181
        %v183 = vmul.f32 %v182, 0.0625
        %vm184 = vcmask 48168
        %185 = vst.msk [vmem:[%s131] sm:$0xff] %vm184, %v183
        %186 = vrot.lane.b32.xlu0 %v132, 32
        %v187 = vpop.permute.xlu0 %186
        %v189 = vsel %vm133, %v187, 0.0
        %190 = vadd.xlane.f32.xlu0 %v189
        %v191 = vpop.xlane.xlu0 %190
        %v192 = vmul.f32 %v191, 0.0625
        %vm193 = vcmask 56368
        %194 = vst.msk [vmem:[%s131] sm:$0xff] %vm193, %v192
        %195 = vrot.lane.b32.xlu0 %v132, 16
        %v196 = vpop.permute.xlu0 %195
        %v198 = vsel %vm133, %v196, 0.0
        %199 = vadd.xlane.f32.xlu0 %v198
        %v200 = vpop.xlane.xlu0 %199
        %v201 = vmul.f32 %v200, 0.0625
        %vm202 = vcmask 64568
        %203 = vst.msk [vmem:[%s131] sm:$0xff] %vm202, %v201
        %p204 = scmp.lt.s32.totalorder %s15, 1
        %s205 = scalar_select %p204, %s15, 1
        %s206 = smul.addr %s205, 8
        %s207 = scalar_lea.vmem %s1, %s206
        // Predicated region
        $region29: #{tpu_custom_call.1} parent=23 // pred_check
          %p208 = pneg %p59
        $region30: #{tpu_custom_call.1} parent=23 // pred_check_branch
          %210 = sbr.rel (%p208) target = $region32
        $region31: #{tpu_custom_call.1} parent=23 // pred_region
          _
        $region32: #{tpu_custom_call.1} parent=23 // pred_fallthru
          _
      $region24: #{tpu_custom_call.1} parent=5 // pred_fallthru
        _
      %p211 = scmp.le.s32.totalorder 2, %s10
      // Predicated region
      $region33: #{tpu_custom_call.1} parent=5 // pred_check
        %p212 = pneg %p211
      $region34: #{tpu_custom_call.1} parent=5 // pred_check_branch
        %214 = sbr.rel (%p212) target = $region36
      $region35: #{tpu_custom_call.1} parent=5 // pred_region
        %s215 = ssub.s32 %s10, 2
        // Predicated region
        $region37: #{tpu_custom_call.1} parent=35 // pred_check
          %p216 = pneg %p65
        $region38: #{tpu_custom_call.1} parent=35 // pred_check_branch
          %218 = sbr.rel (%p216) target = $region40
        $region39: #{tpu_custom_call.1} parent=35 // pred_region
          %p219 = scmp.lt.s32.totalorder %s16, 1
          %s220 = scalar_select %p219, %s16, 1
          %s221 = smul.addr %s220, 8
          %s222 = scalar_lea.vmem %s1, %s221
        $region40: #{tpu_custom_call.1} parent=35 // pred_fallthru
          _
      $region36: #{tpu_custom_call.1} parent=5 // pred_fallthru
        _
    $region6: #{tpu_custom_call.1} parent=1 // loop_footer
      %s14 = sadd.s32 1, %s10
    $region7: #{tpu_custom_call.1} parent=1 // loop_footer_branch
      %9 = sbr.rel target = $region3
    $region8: #{tpu_custom_call.1} parent=1 // loop_exit
      _
    %223 = vsyncpa [#allocation3], 1
    %s224 = scalar_lea.sflag [#allocation3], 1
    %225 = vsyncpa %s224, 1

</llo_original>
